<compile_context>
chip_gen: v7x
topology: tpu7x:2x2x1
jax: 0.10.0
libtpu: 0.0.40
codegen_flags: <defaults>
</compile_context>

<pallas_src>
import functools

import jax
import jax.numpy as jnp
from jax.experimental import pallas as pl
from jax.experimental.pallas import tpu as pltpu


def _round_up(x, m):
    return ((x + m - 1) // m) * m


def _vmem_limit_bytes():
    # ~50% of physical VMEM: 32 MiB on v7x (64 MiB), capped at 48 MiB on
    # 128 MiB parts (v5e/v6e).
    try:
        cap = pltpu.get_tpu_info().vmem_capacity_bytes
    except Exception:
        cap = 64 * 1024 * 1024
    return int(min(cap // 2, 48 * 1024 * 1024))


# ----------------------------------------------------------------------------
# Pallas kernel: per-image fused (folded-tap conv GEMM) + bias + ReLU
# ----------------------------------------------------------------------------
def _make_conv_kernel(tap_starts, C2p, Lpad, TL):
    n_chunks = Lpad // TL  # static

    def kernel(xs_ref, w_ref, b_ref, o_ref, stack_ref):
        # xs_ref   : (1, C2p, Lf)        flattened phase image (spatial on lanes)
        # w_ref    : (Coutp, A*A*C2p)    tap-folded, transposed weights
        # b_ref    : (Coutp, 1)          bias (f32)
        # o_ref    : (1, Coutp, Lpad)    channel-major, 128-lane-aligned output
        # stack_ref: (A*A*C2p, TL)       VMEM staging buffer for the folded GEMM
        w = w_ref[...]
        b = b_ref[...]
        for c in range(n_chunks):                      # static unroll over lane chunks
            off = c * TL
            # Stage the A*A lane-shifted slices along sublanes -> one deep-K operand.
            for t, start in enumerate(tap_starts):
                stack_ref[pl.ds(t * C2p, C2p), :] = xs_ref[0, :, pl.ds(start + off, TL)]
            # Single MXU GEMM with contraction depth A*A*C2p, f32 accumulation.
            acc = jnp.dot(w, stack_ref[...], preferred_element_type=jnp.float32)
            out = jnp.maximum(acc + b, 0.0)            # bias + ReLU (norm = Identity), f32
            o_ref[0, :, pl.ds(off, TL)] = out.astype(o_ref.dtype)

    return kernel


def _fused_conv_bias_relu(xs, wt, b2, *, Coutp, C2p, A, Ws, Lpad, TL, out_dtype):
    N, _, Lf = xs.shape
    tap_starts = tuple(a * Ws + b for a in range(A) for b in range(A))
    Kfold = A * A * C2p
    kernel = _make_conv_kernel(tap_starts, C2p, Lpad, TL)

    flops = 2 * N * Lpad * Coutp * Kfold
    bytes_accessed = (xs.size * xs.dtype.itemsize
                      + wt.size * wt.dtype.itemsize
                      + b2.size * b2.dtype.itemsize
                      + N * Coutp * Lpad * jnp.dtype(out_dtype).itemsize)

    return pl.pallas_call(
        kernel,
        out_shape=jax.ShapeDtypeStruct((N, Coutp, Lpad), out_dtype),
        grid_spec=pltpu.PrefetchScalarGridSpec(
            num_scalar_prefetch=0,
            grid=(N,),                                              # one image per step
            in_specs=[
                pl.BlockSpec((1, C2p, Lf), lambda n: (n, 0, 0)),    # phase image
                pl.BlockSpec((Coutp, Kfold), lambda n: (0, 0)),     # folded weights
                pl.BlockSpec((Coutp, 1), lambda n: (0, 0)),         # bias
            ],
            out_specs=pl.BlockSpec((1, Coutp, Lpad), lambda n: (n, 0, 0)),
            scratch_shapes=[pltpu.VMEM((Kfold, TL), xs.dtype)],     # GEMM staging buffer
        ),
        compiler_params=pltpu.CompilerParams(
            dimension_semantics=("parallel",),                      # images across TCs
            vmem_limit_bytes=_vmem_limit_bytes(),
        ),
        cost_estimate=pl.CostEstimate(flops=flops, transcendentals=0,
                                      bytes_accessed=bytes_accessed),
    )(xs, wt, b2)


# ----------------------------------------------------------------------------
# Conv2dBlock forward (wrapper): pad -> space-to-depth -> fused kernel -> NCHW
# ----------------------------------------------------------------------------
def conv2d_block_forward(x_nchw, weight, bias, *, kernel_size=4, stride=2,
                         padding=1, compute_dtype=jnp.bfloat16):
    """x_nchw: (N, Cin, H, W); weight: (Cout, Cin, KH, KW); bias: (Cout,)."""
    N, Cin, H, W = x_nchw.shape
    Cout, Cin_w, KH, KW = weight.shape
    s = int(stride)
    assert Cin_w == Cin
    assert KH == kernel_size and KW == kernel_size
    assert KH % s == 0 and KW % s == 0, "requires kernel_size % stride == 0 (module default 4/2)"
    A = KH // s                                   # taps per spatial dim in phase space (=2)

    if isinstance(padding, int):
        p_l = p_r = p_t = p_b = padding
    else:
        p_l, p_r, p_t, p_b = padding              # nn.ZeroPad2d order: (l, r, t, b)
    Hp, Wp = H + p_t + p_b, W + p_l + p_r
    Ho = (Hp - KH) // s + 1
    Wo = (Wp - KW) // s + 1
    Ws = Wo + A - 1                               # phase-image row width actually used
    C2 = s * s * Cin

    # Sublane / lane padding (review items: lane-dense 128-aligned output,
    # sublane-aligned C2 / Cout).
    sub = 16 if jnp.dtype(compute_dtype) == jnp.dtype(jnp.bfloat16) else 8
    C2p = _round_up(C2, sub)
    Coutp = _round_up(Cout, 8)                    # f32 accumulator / output sublane
    Lout = Ho * Ws
    if Lout <= 512:
        Lpad = _round_up(Lout, 128)
        TL = Lpad
    else:
        Lpad = _round_up(Lout, 512)
        TL = 512

    # The kernel reads up to Lpad + max tap offset flat phase elements.
    max_tap = (A - 1) * Ws + (A - 1)
    rows_needed = -(-(Lpad + max_tap) // Ws)      # ceil division; >= Ho + A - 1
    H_tot, W_tot = s * rows_needed, s * Ws

    # Single zero-pad covering ZeroPad2d plus the extra phase rows (the extra
    # rows/cols only feed output columns that are discarded below).
    xp = jnp.pad(x_nchw, ((0, 0), (0, 0),
                          (p_t, max(0, H_tot - H - p_t)),
                          (p_l, max(0, W_tot - W - p_l))))
    xp = xp[:, :, :H_tot, :W_tot]

    # Space-to-depth (stride folded into channels), channel order (r_h, r_w, ci):
    # (N, Cin, s*rows, s*Ws) -> (N, C2, rows, Ws) -> flat (N, C2, rows*Ws).
    xs = xp.reshape(N, Cin, rows_needed, s, Ws, s)
    xs = jnp.transpose(xs, (0, 3, 5, 1, 2, 4)).reshape(N, C2, rows_needed * Ws)
    if C2p != C2:
        xs = jnp.pad(xs, ((0, 0), (0, C2p - C2), (0, 0)))
    xs = xs.astype(compute_dtype)

    # Weight (Cout, Cin, KH, KW) -> tap-folded (Coutp, A*A*C2p), K = t*C2p + c2
    # matching the kernel's staging order.
    wt = weight.reshape(Cout, Cin, A, s, A, s)
    wt = jnp.transpose(wt, (0, 2, 4, 3, 5, 1)).reshape(Cout, A * A, C2)
    wt = jnp.pad(wt, ((0, Coutp - Cout), (0, 0), (0, C2p - C2)))
    wt = wt.reshape(Coutp, A * A * C2p).astype(compute_dtype)

    b2 = jnp.pad(bias, (0, Coutp - Cout)).reshape(Coutp, 1).astype(jnp.float32)

    out = _fused_conv_bias_relu(xs, wt, b2, Coutp=Coutp, C2p=C2p, A=A, Ws=Ws,
                                Lpad=Lpad, TL=TL, out_dtype=x_nchw.dtype)

    # (N, Coutp, Lpad) is already channel-major: drop padded channels / lanes,
    # free reshape, then drop the A-1 padded columns per output row.
    return out[:, :Cout, :Lout].reshape(N, Cout, Ho, Ws)[:, :, :, :Wo]


# ----------------------------------------------------------------------------
# Pure-JAX reference (correctness check)
# ----------------------------------------------------------------------------
def conv2d_block_ref(x_nchw, weight, bias, *, stride=2, padding=1):
    xp = jnp.pad(x_nchw, ((0, 0), (0, 0), (padding, padding), (padding, padding)))
    y = jax.lax.conv_general_dilated(
        xp, weight, window_strides=(stride, stride), padding="VALID",
        dimension_numbers=("NCHW", "OIHW", "NCHW"),
    )
    y = y + bias.reshape(1, -1, 1, 1)
    return jnp.maximum(y, 0.0)


# ----------------------------------------------------------------------------
if __name__ == "__main__":
    key = jax.random.PRNGKey(0)
    k_x, k_w, k_b = jax.random.split(key, 3)

    # Small shapes consistent with the module: batch=2, in_ch=4, spatial=16.
    N, Cin, H, W = 2, 4, 16, 16
    Cout, K, S, P = 8, 4, 2, 1

    x = jax.random.normal(k_x, (N, Cin, H, W), dtype=jnp.float32)
    fan_in = Cin * K * K
    weight = jax.random.normal(k_w, (Cout, Cin, K, K), dtype=jnp.float32) / jnp.sqrt(fan_in)
    bias = jax.random.normal(k_b, (Cout,), dtype=jnp.float32) * 0.1

    y_ref = conv2d_block_ref(x, weight, bias, stride=S, padding=P)
    Ho = (H + 2 * P - K) // S + 1

    # Default path: bf16 operands, f32 accumulation.
    fwd = jax.jit(functools.partial(conv2d_block_forward,
                                    kernel_size=K, stride=S, padding=P))
    y = fwd(x, weight, bias)
    jax.block_until_ready(y)
    assert y.shape == (N, Cout, Ho, Ho)
    assert jnp.allclose(y, y_ref, atol=5e-2, rtol=5e-2), "mismatch (bf16 path) vs reference conv"

    # Full-precision path: tight tolerance.
    fwd_f32 = jax.jit(functools.partial(conv2d_block_forward, kernel_size=K,
                                        stride=S, padding=P,
                                        compute_dtype=jnp.float32))
    y32 = fwd_f32(x, weight, bias)
    jax.block_until_ready(y32)
    assert jnp.allclose(y32, y_ref, atol=1e-4, rtol=1e-4), "mismatch (f32 path) vs reference conv"

    print("KERNEL_OK")
</pallas_src>

<mosaic_0001>
module attributes {stable_mosaic.version = 11 : i64} {
  func.func @kernel(%arg0: i32, %arg1: memref<1x16x144xbf16, #tpu.memory_space<vmem>>, %arg2: memref<8x64xbf16, #tpu.memory_space<vmem>>, %arg3: memref<8x1xf32, #tpu.memory_space<vmem>>, %arg4: memref<1x8x128xf32, #tpu.memory_space<vmem>>, %arg5: memref<64x128xbf16, #tpu.memory_space<vmem>>) attributes {dimension_semantics = [#tpu.dimension_semantics<parallel>], iteration_bounds = array<i64: 2>, scalar_prefetch = 0 : i64, scratch_operands = 1 : i64, tpu.core_type = #tpu.core_type<tc>, window_params = [{transform_indices = @transform_0, window_bounds = array<i64: 1, 16, 144>}, {pipeline_mode = #tpu.pipeline_mode<synchronous>, transform_indices = @transform_1, window_bounds = array<i64: 8, 64>}, {pipeline_mode = #tpu.pipeline_mode<synchronous>, transform_indices = @transform_2, window_bounds = array<i64: 8, 1>}, {transform_indices = @transform_3, window_bounds = array<i64: 1, 8, 128>}]} {
    %c0 = arith.constant 0 : index
    %c0_0 = arith.constant 0 : index
    %0 = vector.load %arg2[%c0, %c0_0] : memref<8x64xbf16, #tpu.memory_space<vmem>>, vector<8x64xbf16>
    %c0_1 = arith.constant 0 : index
    %c0_2 = arith.constant 0 : index
    %1 = vector.load %arg3[%c0_1, %c0_2] : memref<8x1xf32, #tpu.memory_space<vmem>>, vector<8x1xf32>
    %c0_3 = arith.constant 0 : index
    %c0_4 = arith.constant 0 : index
    %c0_5 = arith.constant 0 : index
    %2 = vector.load %arg1[%c0_3, %c0_4, %c0_5] : memref<1x16x144xbf16, #tpu.memory_space<vmem>>, vector<1x16x128xbf16>
    %3 = vector.shape_cast %2 : vector<1x16x128xbf16> to vector<16x128xbf16>
    %c0_6 = arith.constant 0 : index
    %c0_7 = arith.constant 0 : index
    %4 = vector.load %arg5[%c0_6, %c0_7] : memref<64x128xbf16, #tpu.memory_space<vmem>>, vector<16x128xbf16>
    tpu.vector_store %arg5[%c0_6, %c0_7], %3 {strides = array<i32>} : memref<64x128xbf16, #tpu.memory_space<vmem>>, vector<16x128xbf16>,
    %c0_8 = arith.constant 0 : index
    %c0_9 = arith.constant 0 : index
    %c1 = arith.constant 1 : index
    %5 = vector.load %arg1[%c0_8, %c0_9, %c1] : memref<1x16x144xbf16, #tpu.memory_space<vmem>>, vector<1x16x128xbf16>
    %6 = vector.shape_cast %5 : vector<1x16x128xbf16> to vector<16x128xbf16>
    %c16 = arith.constant 16 : index
    %c0_10 = arith.constant 0 : index
    %7 = vector.load %arg5[%c16, %c0_10] : memref<64x128xbf16, #tpu.memory_space<vmem>>, vector<16x128xbf16>
    tpu.vector_store %arg5[%c16, %c0_10], %6 {strides = array<i32>} : memref<64x128xbf16, #tpu.memory_space<vmem>>, vector<16x128xbf16>,
    %c0_11 = arith.constant 0 : index
    %c0_12 = arith.constant 0 : index
    %c9 = arith.constant 9 : index
    %8 = vector.load %arg1[%c0_11, %c0_12, %c9] : memref<1x16x144xbf16, #tpu.memory_space<vmem>>, vector<1x16x128xbf16>
    %9 = vector.shape_cast %8 : vector<1x16x128xbf16> to vector<16x128xbf16>
    %c32 = arith.constant 32 : index
    %c0_13 = arith.constant 0 : index
    %10 = vector.load %arg5[%c32, %c0_13] : memref<64x128xbf16, #tpu.memory_space<vmem>>, vector<16x128xbf16>
    tpu.vector_store %arg5[%c32, %c0_13], %9 {strides = array<i32>} : memref<64x128xbf16, #tpu.memory_space<vmem>>, vector<16x128xbf16>,
    %c0_14 = arith.constant 0 : index
    %c0_15 = arith.constant 0 : index
    %c10 = arith.constant 10 : index
    %11 = vector.load %arg1[%c0_14, %c0_15, %c10] : memref<1x16x144xbf16, #tpu.memory_space<vmem>>, vector<1x16x128xbf16>
    %12 = vector.shape_cast %11 : vector<1x16x128xbf16> to vector<16x128xbf16>
    %c48 = arith.constant 48 : index
    %c0_16 = arith.constant 0 : index
    %13 = vector.load %arg5[%c48, %c0_16] : memref<64x128xbf16, #tpu.memory_space<vmem>>, vector<16x128xbf16>
    tpu.vector_store %arg5[%c48, %c0_16], %12 {strides = array<i32>} : memref<64x128xbf16, #tpu.memory_space<vmem>>, vector<16x128xbf16>,
    %c0_17 = arith.constant 0 : index
    %c0_18 = arith.constant 0 : index
    %14 = vector.load %arg5[%c0_17, %c0_18] : memref<64x128xbf16, #tpu.memory_space<vmem>>, vector<64x128xbf16>
    %cst = arith.constant dense<0.000000e+00> : vector<8x128xf32>
    %15 = tpu.matmul %0, %14, %cst {dimension_numbers = #tpu.dot_dimension_numbers<[1], [0], [0], [1], [0, 0, 1, 1], [], []>} : vector<8x64xbf16>, vector<64x128xbf16>, vector<8x128xf32> -> vector<8x128xf32>
    %16 = vector.broadcast %1 : vector<8x1xf32> to vector<8x128xf32>
    %17 = arith.addf %15, %16 : vector<8x128xf32>
    %cst_19 = arith.constant 0.000000e+00 : f32
    %18 = vector.broadcast %cst_19 : f32 to vector<8x128xf32>
    %19 = arith.maximumf %17, %18 : vector<8x128xf32>
    %c0_20 = arith.constant 0 : index
    %c0_21 = arith.constant 0 : index
    %c0_22 = arith.constant 0 : index
    %20 = vector.load %arg4[%c0_20, %c0_21, %c0_22] : memref<1x8x128xf32, #tpu.memory_space<vmem>>, vector<1x8x128xf32>
    %21 = vector.shape_cast %20 : vector<1x8x128xf32> to vector<8x128xf32>
    %22 = vector.shape_cast %19 : vector<8x128xf32> to vector<1x8x128xf32>
    tpu.vector_store %arg4[%c0_20, %c0_21, %c0_22], %22 {strides = array<i32>} : memref<1x8x128xf32, #tpu.memory_space<vmem>>, vector<1x8x128xf32>,
    return
  }
  func.func @transform_0(%arg0: i32) -> (i32, i32, i32) {
    %c0_i32 = arith.constant 0 : i32
    %c0_i32_0 = arith.constant 0 : i32
    %c0_i32_1 = arith.constant 0 : i32
    return %arg0, %c0_i32, %c0_i32_0 : i32, i32, i32
  }
  func.func @transform_1(%arg0: i32) -> (i32, i32) {
    %c0_i32 = arith.constant 0 : i32
    %c0_i32_0 = arith.constant 0 : i32
    %c0_i32_1 = arith.constant 0 : i32
    return %c0_i32, %c0_i32_0 : i32, i32
  }
  func.func @transform_2(%arg0: i32) -> (i32, i32) {
    %c0_i32 = arith.constant 0 : i32
    %c0_i32_0 = arith.constant 0 : i32
    %c0_i32_1 = arith.constant 0 : i32
    return %c0_i32, %c0_i32_0 : i32, i32
  }
  func.func @transform_3(%arg0: i32) -> (i32, i32, i32) {
    %c0_i32 = arith.constant 0 : i32
    %c0_i32_0 = arith.constant 0 : i32
    %c0_i32_1 = arith.constant 0 : i32
    return %arg0, %c0_i32, %c0_i32_0 : i32, i32, i32
  }
}

</mosaic_0001>

<llo_original>
// kernel: conv2d_block_forward.1
$region0: #{conv2d_block_forward.1}
  #allocation0 [shape = 'u32[]', space=smem, size = 0x4, offset = 0x4, fixed_abs, tag = 'smem constant byte address 0x4 - core index']
  #allocation1 [shape = 'u32[144,128]{1,0:T(1,128)}', space=vmem, size = 0x12000, scoped, tag = 'internal scratch']
  #allocation2 [shape = 'bf16[64,128]{1,0:T(16,128)(2,1)}', space=vmem, size = 0x4000, scoped, tag = 'scratch operand']
  %s0 = inlined_call_operand.vmem [shape: bf16[2,16,144], index: 0, kind: input, shape index: {}]
  %s1 = inlined_call_operand.vmem [shape: bf16[8,64], index: 1, kind: input, shape index: {}]
  %s2 = inlined_call_operand.vmem [shape: f32[8,1], index: 2, kind: input, shape index: {}]
  %s3 = inlined_call_operand.vmem [shape: f32[2,8,128], index: 3, kind: output, shape index: {}]
  %s4 = sld [smem:[#allocation0]]
  $region45: #{conv2d_block_forward.1} parent=0
    _
  %s6 = ssub.s32 1, %s4
  %s7 = scalar_select 0, %s6, %s4
  loop: start=0, step=1, limit=4
  $region2: #{conv2d_block_forward.1} parent=0 // loop_pre_header
    _
  $region3: #{conv2d_block_forward.1} parent=0 // loop_header
    %s9 = sphi 0, %s13
    %p10 = scmp.ge.s32.totalorder %s9, 4
    %s19 = sphi 0, %s21
    %s22 = sphi 0, %s19
    %s23 = sphi 0, %s22
    %s39 = sphi 0, %s23
    %s43 = sphi 0, %s43
    %s45 = sphi 0, %s43
    %s46 = sphi 0, %s45
    %s60 = sphi 0, %s46
    %s64 = sphi 0, %s64
    %s66 = sphi 0, %s64
    %s67 = sphi 0, %s66
    %s81 = sphi 0, %s67
    %s87 = sphi 0, %s89
    %s90 = sphi 0, %s87
    %s91 = sphi 0, %s90
    %s107 = sphi 0, %s91
  $region4: #{conv2d_block_forward.1} parent=0 // loop_header_branch
    %12 = sbr.rel (%p10) target = $region8
  $region5: #{conv2d_block_forward.1} parent=0 // loop_body
    %s14 = ssub.s32 %s9, 1
    %s15 = ssub.s32 %s9, 2
    %s16 = sadd.s32 %s9, 1
    %s17 = ssub.s32 %s9, %s16
    %p18 = scmp.eq.s32.totalorder %s17, 0
    %s20 = sadd.s32 %s19, 1
    %s21 = scalar_select %p18, %s19, %s20
    %p24 = pneg %p18
    %p25 = scmp.eq.s32.totalorder %s9, 1
    %p26 = por %p24, %p25
    %p27 = scmp.ne.s32.totalorder %s19, %s22
    %p28 = scmp.eq.s32.totalorder %s9, 0
    %p29 = por %p27, %p28
    %p30 = scmp.ne.s32.totalorder %s19, %s22
    %p31 = scmp.eq.s32.totalorder %s14, 1
    %p32 = por %p30, %p31
    %p33 = scmp.ne.s32.totalorder %s22, %s23
    %p34 = scmp.eq.s32.totalorder %s14, 0
    %p35 = por %p33, %p34
    %p36 = scmp.ne.s32.totalorder %s22, %s23
    %p37 = scmp.eq.s32.totalorder %s15, 1
    %p38 = por %p36, %p37
    %p40 = scmp.ne.s32.totalorder %s23, %s39
    %p41 = scmp.eq.s32.totalorder %s15, 0
    %p42 = por %p40, %p41
    %s44 = sadd.s32 %s43, 1
    %p47 = scmp.eq.s32.totalorder %s9, 1
    %p48 = scmp.ne.s32.totalorder %s43, %s45
    %p49 = scmp.eq.s32.totalorder %s9, 0
    %p50 = por %p48, %p49
    %p51 = scmp.ne.s32.totalorder %s43, %s45
    %p52 = scmp.eq.s32.totalorder %s14, 1
    %p53 = por %p51, %p52
    %p54 = scmp.ne.s32.totalorder %s45, %s46
    %p55 = scmp.eq.s32.totalorder %s14, 0
    %p56 = por %p54, %p55
    %p57 = scmp.ne.s32.totalorder %s45, %s46
    %p58 = scmp.eq.s32.totalorder %s15, 1
    %p59 = por %p57, %p58
    %p61 = scmp.ne.s32.totalorder %s46, %s60
    %p62 = scmp.eq.s32.totalorder %s15, 0
    %p63 = por %p61, %p62
    %s65 = sadd.s32 %s64, 1
    %p68 = scmp.eq.s32.totalorder %s9, 1
    %p69 = scmp.ne.s32.totalorder %s64, %s66
    %p70 = scmp.eq.s32.totalorder %s9, 0
    %p71 = por %p69, %p70
    %p72 = scmp.ne.s32.totalorder %s64, %s66
    %p73 = scmp.eq.s32.totalorder %s14, 1
    %p74 = por %p72, %p73
    %p75 = scmp.ne.s32.totalorder %s66, %s67
    %p76 = scmp.eq.s32.totalorder %s14, 0
    %p77 = por %p75, %p76
    %p78 = scmp.ne.s32.totalorder %s66, %s67
    %p79 = scmp.eq.s32.totalorder %s15, 1
    %p80 = por %p78, %p79
    %p82 = scmp.ne.s32.totalorder %s67, %s81
    %p83 = scmp.eq.s32.totalorder %s15, 0
    %p84 = por %p82, %p83
    %s85 = ssub.s32 %s9, %s16
    %p86 = scmp.eq.s32.totalorder %s85, 0
    %s88 = sadd.s32 %s87, 1
    %s89 = scalar_select %p86, %s87, %s88
    %p92 = pneg %p86
    %p93 = scmp.eq.s32.totalorder %s9, 1
    %p94 = por %p92, %p93
    %p95 = scmp.ne.s32.totalorder %s87, %s90
    %p96 = scmp.eq.s32.totalorder %s9, 0
    %p97 = por %p95, %p96
    %p98 = scmp.ne.s32.totalorder %s87, %s90
    %p99 = scmp.eq.s32.totalorder %s14, 1
    %p100 = por %p98, %p99
    %p101 = scmp.ne.s32.totalorder %s90, %s91
    %p102 = scmp.eq.s32.totalorder %s14, 0
    %p103 = por %p101, %p102
    %p104 = scmp.ne.s32.totalorder %s90, %s91
    %p105 = scmp.eq.s32.totalorder %s15, 1
    %p106 = por %p104, %p105
    %p108 = scmp.ne.s32.totalorder %s91, %s107
    %p109 = scmp.eq.s32.totalorder %s15, 0
    %p110 = por %p108, %p109
    %p111 = scmp.le.s32.totalorder 1, %s9
    %p112 = scmp.lt.s32.totalorder %s9, 3
    %p113 = pnand %p111, %p112
    %p114 = pneg %p113
    // Predicated region
    $region9: #{conv2d_block_forward.1} parent=5 // pred_check
      _
    $region10: #{conv2d_block_forward.1} parent=5 // pred_check_branch
      %116 = sbr.rel (%p113) target = $region12
    $region11: #{conv2d_block_forward.1} parent=5 // pred_region
      %s117 = ssub.s32 %s9, 1
      // Predicated region
      $region13: #{conv2d_block_forward.1} parent=11 // pred_check
        %p118 = pneg %p56
      $region14: #{conv2d_block_forward.1} parent=11 // pred_check_branch
        %120 = sbr.rel (%p118) target = $region16
      $region15: #{conv2d_block_forward.1} parent=11 // pred_region
        _
      $region16: #{conv2d_block_forward.1} parent=11 // pred_fallthru
        _
      // Predicated region
      $region17: #{conv2d_block_forward.1} parent=11 // pred_check
        %p121 = pneg %p77
      $region18: #{conv2d_block_forward.1} parent=11 // pred_check_branch
        %123 = sbr.rel (%p121) target = $region20
      $region19: #{conv2d_block_forward.1} parent=11 // pred_region
        _
      $region20: #{conv2d_block_forward.1} parent=11 // pred_fallthru
        _
    $region12: #{conv2d_block_forward.1} parent=5 // pred_fallthru
      _
    %p124 = scmp.lt.s32.totalorder %s9, 2
    // Predicated region
    $region21: #{conv2d_block_forward.1} parent=5 // pred_check
      %p125 = pneg %p124
    $region22: #{conv2d_block_forward.1} parent=5 // pred_check_branch
      %127 = sbr.rel (%p125) target = $region24
    $region23: #{conv2d_block_forward.1} parent=5 // pred_region
      // Predicated region
      $region25: #{conv2d_block_forward.1} parent=23 // pred_check
        %p128 = pneg %p29
      $region26: #{conv2d_block_forward.1} parent=23 // pred_check_branch
        %130 = sbr.rel (%p128) target = $region28
      $region27: #{conv2d_block_forward.1} parent=23 // pred_region
        %p131 = scmp.lt.s32.totalorder %s9, 1
        %s132 = scalar_select %p131, %s9, 1
        %s133 = smul.addr %s132, 4
        %s134 = smul.addr %s133, 4
        %s135 = scalar_lea.vmem %s0, %s134
      $region28: #{conv2d_block_forward.1} parent=23 // pred_fallthru
        _
    $region24: #{conv2d_block_forward.1} parent=5 // pred_fallthru
      _
    %p136 = scmp.le.s32.totalorder 1, %s9
    %p137 = scmp.lt.s32.totalorder %s9, 3
    %p138 = pnand %p136, %p137
    %p139 = pneg %p138
    // Predicated region
    $region29: #{conv2d_block_forward.1} parent=5 // pred_check
      _
    $region30: #{conv2d_block_forward.1} parent=5 // pred_check_branch
      %141 = sbr.rel (%p138) target = $region32
    $region31: #{conv2d_block_forward.1} parent=5 // pred_region
      %s142 = ssub.s32 %s9, 1
      %p143 = scmp.lt.s32.totalorder %s14, 1
      %s144 = scalar_select %p143, %s14, 1
      %s145 = smul.addr %s144, 4
      %s146 = smul.addr %s145, 4
      %s147 = scalar_lea.vmem %s0, %s146
      %p148 = pneg %p35
      %p149 = pneg %p32
      %p150 = pneg %p56
      %p151 = pneg %p53
      %p152 = pneg %p77
      %p153 = pneg %p74
      %p154 = pneg %p103
      %p155 = pneg %p100
      %p156 = scmp.lt.s32.totalorder %s14, 1
      %s157 = scalar_select %p156, %s14, 1
      %s158 = smul.addr %s157, 8
      %s159 = scalar_lea.vmem %s3, %s158
      %p160 = scmp.lt.s32.totalorder %s14, 1
      %s161 = scalar_select %p160, %s14, 1
      %s162 = smul.addr %s161, 4
      %s163 = smul.addr %s162, 4
      %s164 = scalar_lea.vmem %s0, %s163
      %p165 = scmp.lt.s32.totalorder %s14, 1
      %s166 = scalar_select %p165, %s14, 1
      %s167 = smul.addr %s166, 8
      %s168 = scalar_lea.vmem %s3, %s167
      %v170 = vld [vmem:[%s1] sm:$0xf]
      %v171 = vld [vmem:[%s2] sm:$0xff]
      %v172 = vld [vmem:[%s164] sm:$0xf]
      %v173 = vld [vmem:[%s164 + $0x8] sm:$0xf]
      %v176 = vunpack.c.l.b16 %v172
      %v177 = vunpack.c.l.b16 %v173
      %v178 = vpack.c.b16 %v177, %v176
      %180 = vst [vmem:[#allocation2] sm:$0xff] %v178
      %v181 = vld [vmem:[%s164] sm:$0xff]
      %v182 = vld [vmem:[%s164 + $0x8] sm:$0xff]
      %v185 = vunpack.c.l.b16 %v181
      %v186 = vunpack.c.h.b16 %v181
      %v187 = vunpack.c.l.b16 %v182
      %v188 = vunpack.c.h.b16 %v182
      %v189 = vpack.c.b16 %v187, %v185
      %v190 = vpack.c.b16 %v188, %v186
      %191 = vrot.lane.b32.xlu0 %v189, 127
      %v192 = vpop.permute.xlu0 %191
      %193 = vrot.lane.b32.xlu0 %v190, 127
      %v194 = vpop.permute.xlu0 %193
      %vm195 = vcmask 1039360
      %v196 = vsel %vm195, %v192, %v194
      %198 = vst [vmem:[#allocation2 + $0x8] sm:$0xff] %v196
      %v199 = vld [vmem:[%s164] sm:$0xff]
      %v200 = vld [vmem:[%s164 + $0x8] sm:$0xff]
      %v203 = vunpack.c.l.b16 %v199
      %v204 = vunpack.c.h.b16 %v199
      %v205 = vunpack.c.l.b16 %v200
      %v206 = vunpack.c.h.b16 %v200
      %v207 = vpack.c.b16 %v205, %v203
      %v208 = vpack.c.b16 %v206, %v204
      %209 = vrot.lane.b32.xlu0 %v207, 119
      %v210 = vpop.permute.xlu0 %209
      %211 = vrot.lane.b32.xlu0 %v208, 119
      %v212 = vpop.permute.xlu0 %211
      %vm213 = vcmask 973824
      %v214 = vsel %vm213, %v210, %v212
      %216 = vst [vmem:[#allocation2 + $0x10] sm:$0xff] %v214
      %v217 = vld [vmem:[%s164] sm:$0xff]
      %v218 = vld [vmem:[%s164 + $0x8] sm:$0xff]
      %v221 = vunpack.c.l.b16 %v217
      %v222 = vunpack.c.h.b16 %v217
      %v223 = vunpack.c.l.b16 %v218
      %v224 = vunpack.c.h.b16 %v218
      %v225 = vpack.c.b16 %v223, %v221
      %v226 = vpack.c.b16 %v224, %v222
      %227 = vrot.lane.b32.xlu0 %v225, 118
      %v228 = vpop.permute.xlu0 %227
      %229 = vrot.lane.b32.xlu0 %v226, 118
      %v230 = vpop.permute.xlu0 %229
      %vm231 = vcmask 965632
      %v232 = vsel %vm231, %v228, %v230
      %234 = vst [vmem:[#allocation2 + $0x18] sm:$0xff] %v232
      %v235 = vld [vmem:[#allocation2] sm:$0xff]
      %v236 = vld [vmem:[#allocation2 + $0x8] sm:$0xff]
      %v237 = vld [vmem:[#allocation2 + $0x10] sm:$0xff]
      %v238 = vld [vmem:[#allocation2 + $0x18] sm:$0xff]
      %240 = vset.pattern.permute.xlu0 0
      %241 = vperm.xlu0 %240, %v171
      %v242 = vpop.permute.xlu0 %241
      %vm244 = vcmask 523264
      %v246 = vsel %vm244, %v170, 0
      %248 = vmatprep.subr.bf16.mxu0 0
      %249 = vmatpush1.bf16.msra.mxu0 %v235
      %250 = vmatprep.subr.bf16.mxu0 0
      %251 = vmatpush1.bf16.msra.mxu0 %v236
      %252 = vmatprep.subr.bf16.mxu0 0
      %253 = vmatpush1.bf16.msra.mxu0 %v237
      %254 = vmatprep.subr.bf16.mxu0 0
      %255 = vmatpush1.bf16.msra.mxu0 %v238
      %256 = vmatprep.subr.bf16.mxu0 0
      %257 = vmatpush1.bf16.msra.mxu0 0
      %258 = vmatprep.subr.bf16.mxu0 0
      %259 = vmatpush1.bf16.msra.mxu0 0
      %260 = vmatprep.subr.bf16.mxu0 0
      %261 = vmatpush1.bf16.msra.mxu0 0
      %262 = vmatprep.subr.bf16.mxu0 0
      %263 = vmatpush1.bf16.msra.mxu0 0
      %264 = vmatprep.subr.bf16.mxu0 0
      %265 = vmatpush1.bf16.msra.mxu0 0
      %266 = vmatprep.subr.bf16.mxu0 0
      %267 = vmatpush1.bf16.msra.mxu0 0
      %268 = vmatprep.subr.bf16.mxu0 0
      %269 = vmatpush1.bf16.msra.mxu0 0
      %270 = vmatprep.subr.bf16.mxu0 0
      %271 = vmatpush1.bf16.msra.mxu0 0
      %272 = vmatprep.subr.bf16.mxu0 0
      %273 = vmatpush1.bf16.msra.mxu0 0
      %274 = vmatprep.subr.bf16.mxu0 0
      %275 = vmatpush1.bf16.msra.mxu0 0
      %276 = vmatprep.subr.bf16.mxu0 0
      %277 = vmatpush1.bf16.msra.mxu0 0
      %278 = vmatprep.subr.bf16.mxu0 0
      %279 = vmatpush1.bf16.msra.mxu0 0
      %280 = vmatprep.mubr.bf16.mxu0 0
      %281 = vmatmul.mubr.bf16.gmra.mrb[0].mxu0 %v246
      %v282 = vpop.f32.mrb[0].mxu0
      %v283 = vadd.f32 %v242, %v282
      %v284 = vpop.f32.mrb[0].mxu0
      %v285 = vpop.f32.mrb[0].mxu0
      %v286 = vpop.f32.mrb[0].mxu0
      %287 = vdwg.mxu0
      %v288 = vmax.f32 %v283, 0.0
      %289 = vst [vmem:[%s168] sm:$0xff] %v288
      %p290 = scmp.lt.s32.totalorder %s14, 1
      %s291 = scalar_select %p290, %s14, 1
      %s292 = smul.addr %s291, 8
      %s293 = scalar_lea.vmem %s3, %s292
      // Predicated region
      $region33: #{conv2d_block_forward.1} parent=31 // pred_check
        %p294 = pneg %p100
      $region34: #{conv2d_block_forward.1} parent=31 // pred_check_branch
        %296 = sbr.rel (%p294) target = $region36
      $region35: #{conv2d_block_forward.1} parent=31 // pred_region
        _
      $region36: #{conv2d_block_forward.1} parent=31 // pred_fallthru
        _
    $region32: #{conv2d_block_forward.1} parent=5 // pred_fallthru
      _
    %p297 = scmp.le.s32.totalorder 2, %s9
    // Predicated region
    $region37: #{conv2d_block_forward.1} parent=5 // pred_check
      %p298 = pneg %p297
    $region38: #{conv2d_block_forward.1} parent=5 // pred_check_branch
      %300 = sbr.rel (%p298) target = $region40
    $region39: #{conv2d_block_forward.1} parent=5 // pred_region
      %s301 = ssub.s32 %s9, 2
      // Predicated region
      $region41: #{conv2d_block_forward.1} parent=39 // pred_check
        %p302 = pneg %p106
      $region42: #{conv2d_block_forward.1} parent=39 // pred_check_branch
        %304 = sbr.rel (%p302) target = $region44
      $region43: #{conv2d_block_forward.1} parent=39 // pred_region
        %p305 = scmp.lt.s32.totalorder %s15, 1
        %s306 = scalar_select %p305, %s15, 1
        %s307 = smul.addr %s306, 8
        %s308 = scalar_lea.vmem %s3, %s307
      $region44: #{conv2d_block_forward.1} parent=39 // pred_fallthru
        _
    $region40: #{conv2d_block_forward.1} parent=5 // pred_fallthru
      _
  $region6: #{conv2d_block_forward.1} parent=0 // loop_footer
    %s13 = sadd.s32 1, %s9
  $region7: #{conv2d_block_forward.1} parent=0 // loop_footer_branch
    %8 = sbr.rel target = $region3
  $region8: #{conv2d_block_forward.1} parent=0 // loop_exit
    _

</llo_original>
